<compile_context>
chip_gen: v7x
topology: tpu7x:2x2x1
jax: 0.10.0
libtpu: 0.0.40
codegen_flags: <defaults>
</compile_context>

<pallas_src>
import functools

import jax
import jax.numpy as jnp
from jax.experimental import pallas as pl
from jax.experimental.pallas import tpu as pltpu


def _round_up(x, m):
    return ((x + m - 1) // m) * m


# ---------------------------------------------------------------------------
# Fused kernel.
#   x_ref:     (B_TILE, C, hw_tile)   natural layout: C on sublanes, HW on lanes
#   bn2d_ref:  (2, C, 1)              row 0 = BN2d scale, row 1 = BN2d shift
#   extra_ref: (B_TILE, D_pad)        x_clf at cols [C:D] + pad-correction at [0:C]
#   w_ref:     (D_pad, N_pad)         linear.weight.T  (zero padded)
#   wbw_ref:   (N_pad, D_pad)         linear_bw.weight.T
#   nvec_ref:  (4, N_pad)             rows: [bias, relu(b0+1), bn1d_scale, bn1d_shift]
#   dvec_ref:  (1, D_pad)             linear_bw.bias
#   o_ref:     (B_TILE, N_pad)
#   acc_ref:   (B_TILE, D_pad) f32    running spatial sum (cols [0:C] used)
# ---------------------------------------------------------------------------
def fused_kernel(x_ref, bn2d_ref, extra_ref, w_ref, wbw_ref, nvec_ref,
                 dvec_ref, o_ref, acc_ref, *, cls, c, inv_hw):
    k = pl.program_id(1)
    nk = pl.num_programs(1)

    @pl.when(k == 0)
    def _init():
        acc_ref[...] = jnp.zeros_like(acc_ref)

    # ---- BN2d + ReLU + partial spatial sum (no per-iteration masking) ----
    bn = bn2d_ref[...]                                  # (2, C, 1)
    y = jnp.maximum(x_ref[...] * bn[0:1] + bn[1:2], 0.0)
    acc_ref[:, :c] += jnp.sum(y, axis=-1)               # (B_TILE, C), XLU reduce

    # ---- Classifier head, once, at the last reduction step ----
    @pl.when(k == nk - 1)
    def _finalize():
        # extra = [pad-correction | x_clf | 0...]  -> out == concat(pooled, x_clf)
        out = acc_ref[...] * inv_hw + extra_ref[...]     # (B_TILE, D_pad)
        w = w_ref[...]
        nvec = nvec_ref[...]
        b = nvec[0:1]
        rep = jnp.dot(out, w, preferred_element_type=jnp.float32) + b
        if cls != 0:                                     # static -> unrolled
            wbw = wbw_ref[...]
            bbw = dvec_ref[...]
            b0 = nvec[1:2]                               # already relu(b0 + 1)
            for _ in range(cls):
                back = jnp.dot(rep, wbw, preferred_element_type=jnp.float32) + bbw
                h = jnp.maximum(out - back, 0.0)
                rep = (jnp.dot(h, w, preferred_element_type=jnp.float32) + b) * b0 + rep
        o_ref[...] = rep * nvec[2:3] + nvec[3:4]         # BN1d affine


# ---------------------------------------------------------------------------
# Parameter construction (deterministic, mirrors shapes from __init__)
# ---------------------------------------------------------------------------
def init_params(key, in_channel_block, in_channel_clf, num_classes):
    d = in_channel_block + in_channel_clf
    k = jax.random.split(key, 4)
    return dict(
        # BatchNorm2d(in_channel_block)
        bn_gamma=jnp.ones((in_channel_block,), jnp.float32),
        bn_beta=jnp.zeros((in_channel_block,), jnp.float32),
        bn_mean=jnp.zeros((in_channel_block,), jnp.float32),
        bn_var=jnp.ones((in_channel_block,), jnp.float32),
        # Linear(d, num_classes)
        lin_w=jax.random.normal(k[0], (num_classes, d), jnp.float32) * 0.1,
        lin_b=jax.random.normal(k[1], (num_classes,), jnp.float32) * 0.1,
        # Linear(num_classes, d)  (linear_bw)
        lbw_w=jax.random.normal(k[2], (d, num_classes), jnp.float32) * 0.1,
        lbw_b=jax.random.normal(k[3], (d,), jnp.float32) * 0.1,
        # b0 parameter: torch.zeros(1, num_classes)
        b0=jnp.zeros((1, num_classes), jnp.float32),
        # BatchNorm1d(num_classes)
        bn1_gamma=jnp.ones((num_classes,), jnp.float32),
        bn1_beta=jnp.zeros((num_classes,), jnp.float32),
        bn1_mean=jnp.zeros((num_classes,), jnp.float32),
        bn1_var=jnp.ones((num_classes,), jnp.float32),
    )


# ---------------------------------------------------------------------------
# One-time parameter packing/padding (hoisted out of the per-call path)
# ---------------------------------------------------------------------------
def prepare_params(params, eps=1e-5):
    f32 = jnp.float32
    C = params["bn_gamma"].shape[0]
    N, D = params["lin_w"].shape
    D_pad = _round_up(D, 128)
    N_pad = _round_up(N, 128)

    scale2d = (params["bn_gamma"] / jnp.sqrt(params["bn_var"] + eps)).astype(f32)
    shift2d = (params["bn_beta"] - params["bn_mean"] * scale2d).astype(f32)
    bn2d = jnp.stack([scale2d, shift2d]).reshape(2, C, 1)

    w_p = jnp.zeros((D_pad, N_pad), f32).at[:D, :N].set(params["lin_w"].T)
    wbw_p = jnp.zeros((N_pad, D_pad), f32).at[:N, :D].set(params["lbw_w"].T)

    scale1d = params["bn1_gamma"] / jnp.sqrt(params["bn1_var"] + eps)
    shift1d = params["bn1_beta"] - params["bn1_mean"] * scale1d
    nvec = jnp.zeros((4, N_pad), f32)
    nvec = nvec.at[0, :N].set(params["lin_b"])
    nvec = nvec.at[1, :N].set(jnp.maximum(params["b0"][0] + 1.0, 0.0))  # relu(b0+1)
    nvec = nvec.at[2, :N].set(scale1d)
    nvec = nvec.at[3, :N].set(shift1d)

    dvec = jnp.zeros((1, D_pad), f32).at[0, :D].set(params["lbw_b"])

    return dict(bn2d=bn2d, w=w_p, wbw=wbw_p, nvec=nvec, dvec=dvec,
                shift2d=shift2d)


# ---------------------------------------------------------------------------
# Forward wrapper
# ---------------------------------------------------------------------------
def classifier_module_last(x_block, x_clf, prep, *, cls, num_classes):
    f32 = jnp.float32
    B, C, H, W = x_block.shape
    assert H == W, "avg_pool2d(kernel=W) acts as global pooling only when H == W"
    assert prep["bn2d"].shape[1] == C
    HW = H * W
    clf = x_clf.shape[1]
    D = C + clf
    D_pad, N_pad = prep["w"].shape
    assert D <= D_pad and num_classes <= N_pad

    budget = 4 * 1024 * 1024                      # bytes per x VMEM buffer

    # --- batch tiling (no padding in the common small-B case) ---
    max_btile = max(1, budget // (C * 128 * 4))
    if B <= max_btile and B <= 256:
        B_TILE, B_pad = B, B
    else:
        B_TILE = min(256, max(8, (max_btile // 8) * 8))
        B_pad = _round_up(B, B_TILE)

    # --- spatial tiling (reduction axis, lane-aligned) ---
    HW128 = _round_up(HW, 128)
    bytes_per_col = B_TILE * C * 4
    max_tile = max(128, (budget // bytes_per_col) // 128 * 128)
    hw_tile = min(HW128, max_tile)
    grid_k = pl.cdiv(HW128, hw_tile)
    HW_pad = grid_k * hw_tile
    pad_hw = HW_pad - HW

    # --- x in natural (B, C, HW) layout: reshape only, pad only if needed ---
    x_r = x_block.reshape(B, C, HW).astype(f32)
    if pad_hw or B_pad != B:
        x_r = jnp.pad(x_r, ((0, B_pad - B), (0, 0), (0, pad_hw)))

    # --- extra = x_clf at cols [C:D] + one-time padding correction at [0:C] ---
    extra = jnp.zeros((B_pad, D_pad), f32).at[:B, C:D].set(x_clf.astype(f32))
    if pad_hw:
        # Each zero-padded spatial lane contributes relu(shift2d) to the sum.
        corr = -(pad_hw / HW) * jnp.maximum(prep["shift2d"], 0.0)      # (C,)
        extra = extra.at[:, :C].add(corr[None, :])

    grid = (B_pad // B_TILE, grid_k)

    out_p = pl.pallas_call(
        functools.partial(fused_kernel, cls=cls, c=C, inv_hw=1.0 / HW),
        out_shape=jax.ShapeDtypeStruct((B_pad, N_pad), f32),
        grid=grid,
        in_specs=[
            pl.BlockSpec((B_TILE, C, hw_tile), lambda b, k: (b, 0, k)),
            pl.BlockSpec((2, C, 1), lambda b, k: (0, 0, 0)),
            pl.BlockSpec((B_TILE, D_pad), lambda b, k: (b, 0)),
            pl.BlockSpec((D_pad, N_pad), lambda b, k: (0, 0)),
            pl.BlockSpec((N_pad, D_pad), lambda b, k: (0, 0)),
            pl.BlockSpec((4, N_pad), lambda b, k: (0, 0)),
            pl.BlockSpec((1, D_pad), lambda b, k: (0, 0)),
        ],
        out_specs=pl.BlockSpec((B_TILE, N_pad), lambda b, k: (b, 0)),
        scratch_shapes=[pltpu.VMEM((B_TILE, D_pad), jnp.float32)],
        compiler_params=pltpu.CompilerParams(
            dimension_semantics=("parallel", "arbitrary"),
            vmem_limit_bytes=48 * 1024 * 1024),
    )(x_r, prep["bn2d"], extra, prep["w"], prep["wbw"], prep["nvec"],
      prep["dvec"])

    return out_p[:B, :num_classes]


# ---------------------------------------------------------------------------
# Pure-JAX reference (for correctness check)
# ---------------------------------------------------------------------------
def reference(x_block, x_clf, params, cls, eps=1e-5):
    scale2d = params["bn_gamma"] / jnp.sqrt(params["bn_var"] + eps)
    shift2d = params["bn_beta"] - params["bn_mean"] * scale2d
    y = jnp.maximum(x_block * scale2d[None, :, None, None]
                    + shift2d[None, :, None, None], 0.0)
    pooled = jnp.mean(y, axis=(2, 3))
    out = jnp.concatenate([pooled, x_clf], axis=1)

    def linear(x, w, b):
        return x @ w.T + b

    rep = linear(out, params["lin_w"], params["lin_b"])
    if cls != 0:
        b0 = jnp.maximum(params["b0"] + 1.0, 0.0)
        for _ in range(cls):
            back = linear(rep, params["lbw_w"], params["lbw_b"])
            rep = linear(jnp.maximum(out - back, 0.0),
                         params["lin_w"], params["lin_b"]) * b0 + rep
    scale1d = params["bn1_gamma"] / jnp.sqrt(params["bn1_var"] + eps)
    shift1d = params["bn1_beta"] - params["bn1_mean"] * scale1d
    return rep * scale1d[None, :] + shift1d[None, :]


if __name__ == "__main__":
    B = 2
    in_channel_block = 4
    in_channel_clf = 8
    num_classes = 10
    H = W = 16
    cls = 2

    key = jax.random.PRNGKey(0)
    k_x, k_c, k_p = jax.random.split(key, 3)
    x_block = jax.random.normal(k_x, (B, in_channel_block, H, W), jnp.float32)
    x_clf = jax.random.normal(k_c, (B, in_channel_clf), jnp.float32)
    params = init_params(k_p, in_channel_block, in_channel_clf, num_classes)

    prep = prepare_params(params)                 # one-time, reused across calls
    fwd = jax.jit(functools.partial(classifier_module_last,
                                    cls=cls, num_classes=num_classes))
    out = jax.block_until_ready(fwd(x_block, x_clf, prep))

    ref = reference(x_block, x_clf, params, cls)
    assert out.shape == (B, num_classes)
    assert jnp.allclose(out, ref, atol=1e-3, rtol=1e-3), (out, ref)

    print("KERNEL_OK")
</pallas_src>

<mosaic_0001>
module attributes {stable_mosaic.version = 11 : i64} {
  func.func @fused_kernel(%arg0: i32, %arg1: i32, %arg2: memref<2x4x256xf32, #tpu.memory_space<vmem>>, %arg3: memref<2x4x1xf32, #tpu.memory_space<vmem>>, %arg4: memref<2x128xf32, #tpu.memory_space<vmem>>, %arg5: memref<128x128xf32, #tpu.memory_space<vmem>>, %arg6: memref<128x128xf32, #tpu.memory_space<vmem>>, %arg7: memref<4x128xf32, #tpu.memory_space<vmem>>, %arg8: memref<1x128xf32, #tpu.memory_space<vmem>>, %arg9: memref<2x128xf32, #tpu.memory_space<vmem>>, %arg10: memref<2x128xf32, #tpu.memory_space<vmem>>) attributes {dimension_semantics = [#tpu.dimension_semantics<parallel>, #tpu.dimension_semantics<arbitrary>], iteration_bounds = array<i64: 1, 1>, scalar_prefetch = 0 : i64, scratch_operands = 1 : i64, tpu.core_type = #tpu.core_type<tc>, window_params = [{transform_indices = @transform_0, window_bounds = array<i64: 2, 4, 256>}, {pipeline_mode = #tpu.pipeline_mode<synchronous>, transform_indices = @transform_1, window_bounds = array<i64: 2, 4, 1>}, {transform_indices = @transform_2, window_bounds = array<i64: 2, 128>}, {pipeline_mode = #tpu.pipeline_mode<synchronous>, transform_indices = @transform_3, window_bounds = array<i64: 128, 128>}, {pipeline_mode = #tpu.pipeline_mode<synchronous>, transform_indices = @transform_4, window_bounds = array<i64: 128, 128>}, {pipeline_mode = #tpu.pipeline_mode<synchronous>, transform_indices = @transform_5, window_bounds = array<i64: 4, 128>}, {pipeline_mode = #tpu.pipeline_mode<synchronous>, transform_indices = @transform_6, window_bounds = array<i64: 1, 128>}, {transform_indices = @transform_7, window_bounds = array<i64: 2, 128>}]} {
    %c0_i32 = arith.constant 0 : i32
    %0 = arith.cmpi eq, %arg1, %c0_i32 : i32
    %1 = arith.extui %0 : i1 to i32
    %c0_i32_0 = arith.constant 0 : i32
    %2 = arith.cmpi ne, %1, %c0_i32_0 : i32
    scf.if %2 {
      %cst_13 = arith.constant 0.000000e+00 : f32
      %20 = vector.broadcast %cst_13 : f32 to vector<2x128xf32>
      %c0_14 = arith.constant 0 : index
      %c0_15 = arith.constant 0 : index
      %21 = vector.load %arg10[%c0_14, %c0_15] : memref<2x128xf32, #tpu.memory_space<vmem>>, vector<2x128xf32>
      tpu.vector_store %arg10[%c0_14, %c0_15], %20 {strides = array<i32>} : memref<2x128xf32, #tpu.memory_space<vmem>>, vector<2x128xf32>,
    } else {
    }
    %c0 = arith.constant 0 : index
    %c0_1 = arith.constant 0 : index
    %c0_2 = arith.constant 0 : index
    %3 = vector.load %arg3[%c0, %c0_1, %c0_2] : memref<2x4x1xf32, #tpu.memory_space<vmem>>, vector<2x4x1xf32>
    %c0_3 = arith.constant 0 : index
    %c0_4 = arith.constant 0 : index
    %c0_5 = arith.constant 0 : index
    %4 = vector.load %arg2[%c0_3, %c0_4, %c0_5] : memref<2x4x256xf32, #tpu.memory_space<vmem>>, vector<2x4x256xf32>
    %5 = vector.extract_strided_slice %3 {offsets = [0, 0, 0], sizes = [1, 4, 1], strides = [1, 1, 1]} : vector<2x4x1xf32> to vector<1x4x1xf32>
    %6 = vector.broadcast %5 : vector<1x4x1xf32> to vector<2x4x256xf32>
    %7 = arith.mulf %4, %6 : vector<2x4x256xf32>
    %8 = vector.extract_strided_slice %3 {offsets = [1, 0, 0], sizes = [1, 4, 1], strides = [1, 1, 1]} : vector<2x4x1xf32> to vector<1x4x1xf32>
    %9 = vector.broadcast %8 : vector<1x4x1xf32> to vector<2x4x256xf32>
    %10 = arith.addf %7, %9 : vector<2x4x256xf32>
    %cst = arith.constant 0.000000e+00 : f32
    %11 = vector.broadcast %cst : f32 to vector<2x4x256xf32>
    %12 = arith.maximumf %10, %11 : vector<2x4x256xf32>
    %c0_6 = arith.constant 0 : index
    %c0_7 = arith.constant 0 : index
    %13 = vector.load %arg10[%c0_6, %c0_7] : memref<2x128xf32, #tpu.memory_space<vmem>>, vector<2x4xf32>
    %cst_8 = arith.constant dense<0.000000e+00> : vector<2x4xf32>
    %14 = vector.multi_reduction <add>, %12, %cst_8 [2] : vector<2x4x256xf32> to vector<2x4xf32>
    %15 = arith.addf %13, %14 : vector<2x4xf32>
    %c0_9 = arith.constant 0 : index
    %c0_10 = arith.constant 0 : index
    %16 = vector.load %arg10[%c0_9, %c0_10] : memref<2x128xf32, #tpu.memory_space<vmem>>, vector<2x4xf32>
    tpu.vector_store %arg10[%c0_9, %c0_10], %15 {strides = array<i32>} : memref<2x128xf32, #tpu.memory_space<vmem>>, vector<2x4xf32>,
    %c0_i32_11 = arith.constant 0 : i32
    %17 = arith.cmpi eq, %arg1, %c0_i32_11 : i32
    %18 = arith.extui %17 : i1 to i32
    %c0_i32_12 = arith.constant 0 : i32
    %19 = arith.cmpi ne, %18, %c0_i32_12 : i32
    scf.if %19 {
      %c0_13 = arith.constant 0 : index
      %c0_14 = arith.constant 0 : index
      %20 = vector.load %arg10[%c0_13, %c0_14] : memref<2x128xf32, #tpu.memory_space<vmem>>, vector<2x128xf32>
      %cst_15 = arith.constant 3.906250e-03 : f32
      %21 = vector.broadcast %cst_15 : f32 to vector<2x128xf32>
      %22 = arith.mulf %20, %21 : vector<2x128xf32>
      %c0_16 = arith.constant 0 : index
      %c0_17 = arith.constant 0 : index
      %23 = vector.load %arg4[%c0_16, %c0_17] : memref<2x128xf32, #tpu.memory_space<vmem>>, vector<2x128xf32>
      %24 = arith.addf %22, %23 : vector<2x128xf32>
      %c0_18 = arith.constant 0 : index
      %c0_19 = arith.constant 0 : index
      %25 = vector.load %arg5[%c0_18, %c0_19] : memref<128x128xf32, #tpu.memory_space<vmem>>, vector<128x128xf32>
      %c0_20 = arith.constant 0 : index
      %c0_21 = arith.constant 0 : index
      %26 = vector.load %arg7[%c0_20, %c0_21] : memref<4x128xf32, #tpu.memory_space<vmem>>, vector<4x128xf32>
      %27 = vector.extract_strided_slice %26 {offsets = [0, 0], sizes = [1, 128], strides = [1, 1]} : vector<4x128xf32> to vector<1x128xf32>
      %cst_22 = arith.constant dense<0.000000e+00> : vector<2x128xf32>
      %28 = tpu.matmul %24, %25, %cst_22 {dimension_numbers = #tpu.dot_dimension_numbers<[1], [0], [0], [1], [0, 0, 1, 1], [], []>} : vector<2x128xf32>, vector<128x128xf32>, vector<2x128xf32> -> vector<2x128xf32>
      %29 = vector.broadcast %27 : vector<1x128xf32> to vector<2x128xf32>
      %30 = arith.addf %28, %29 : vector<2x128xf32>
      %c0_23 = arith.constant 0 : index
      %c0_24 = arith.constant 0 : index
      %31 = vector.load %arg6[%c0_23, %c0_24] : memref<128x128xf32, #tpu.memory_space<vmem>>, vector<128x128xf32>
      %c0_25 = arith.constant 0 : index
      %c0_26 = arith.constant 0 : index
      %32 = vector.load %arg8[%c0_25, %c0_26] : memref<1x128xf32, #tpu.memory_space<vmem>>, vector<1x128xf32>
      %33 = vector.extract_strided_slice %26 {offsets = [1, 0], sizes = [1, 128], strides = [1, 1]} : vector<4x128xf32> to vector<1x128xf32>
      %cst_27 = arith.constant dense<0.000000e+00> : vector<2x128xf32>
      %34 = tpu.matmul %30, %31, %cst_27 {dimension_numbers = #tpu.dot_dimension_numbers<[1], [0], [0], [1], [0, 0, 1, 1], [], []>} : vector<2x128xf32>, vector<128x128xf32>, vector<2x128xf32> -> vector<2x128xf32>
      %35 = vector.broadcast %32 : vector<1x128xf32> to vector<2x128xf32>
      %36 = arith.addf %34, %35 : vector<2x128xf32>
      %37 = arith.subf %24, %36 : vector<2x128xf32>
      %cst_28 = arith.constant 0.000000e+00 : f32
      %38 = vector.broadcast %cst_28 : f32 to vector<2x128xf32>
      %39 = arith.maximumf %37, %38 : vector<2x128xf32>
      %cst_29 = arith.constant dense<0.000000e+00> : vector<2x128xf32>
      %40 = tpu.matmul %39, %25, %cst_29 {dimension_numbers = #tpu.dot_dimension_numbers<[1], [0], [0], [1], [0, 0, 1, 1], [], []>} : vector<2x128xf32>, vector<128x128xf32>, vector<2x128xf32> -> vector<2x128xf32>
      %41 = vector.broadcast %27 : vector<1x128xf32> to vector<2x128xf32>
      %42 = arith.addf %40, %41 : vector<2x128xf32>
      %43 = vector.broadcast %33 : vector<1x128xf32> to vector<2x128xf32>
      %44 = arith.mulf %42, %43 : vector<2x128xf32>
      %45 = arith.addf %44, %30 : vector<2x128xf32>
      %cst_30 = arith.constant dense<0.000000e+00> : vector<2x128xf32>
      %46 = tpu.matmul %45, %31, %cst_30 {dimension_numbers = #tpu.dot_dimension_numbers<[1], [0], [0], [1], [0, 0, 1, 1], [], []>} : vector<2x128xf32>, vector<128x128xf32>, vector<2x128xf32> -> vector<2x128xf32>
      %47 = vector.broadcast %32 : vector<1x128xf32> to vector<2x128xf32>
      %48 = arith.addf %46, %47 : vector<2x128xf32>
      %49 = arith.subf %24, %48 : vector<2x128xf32>
      %cst_31 = arith.constant 0.000000e+00 : f32
      %50 = vector.broadcast %cst_31 : f32 to vector<2x128xf32>
      %51 = arith.maximumf %49, %50 : vector<2x128xf32>
      %cst_32 = arith.constant dense<0.000000e+00> : vector<2x128xf32>
      %52 = tpu.matmul %51, %25, %cst_32 {dimension_numbers = #tpu.dot_dimension_numbers<[1], [0], [0], [1], [0, 0, 1, 1], [], []>} : vector<2x128xf32>, vector<128x128xf32>, vector<2x128xf32> -> vector<2x128xf32>
      %53 = vector.broadcast %27 : vector<1x128xf32> to vector<2x128xf32>
      %54 = arith.addf %52, %53 : vector<2x128xf32>
      %55 = vector.broadcast %33 : vector<1x128xf32> to vector<2x128xf32>
      %56 = arith.mulf %54, %55 : vector<2x128xf32>
      %57 = arith.addf %56, %45 : vector<2x128xf32>
      %58 = vector.extract_strided_slice %26 {offsets = [2, 0], sizes = [1, 128], strides = [1, 1]} : vector<4x128xf32> to vector<1x128xf32>
      %59 = vector.broadcast %58 : vector<1x128xf32> to vector<2x128xf32>
      %60 = arith.mulf %57, %59 : vector<2x128xf32>
      %61 = vector.extract_strided_slice %26 {offsets = [3, 0], sizes = [1, 128], strides = [1, 1]} : vector<4x128xf32> to vector<1x128xf32>
      %62 = vector.broadcast %61 : vector<1x128xf32> to vector<2x128xf32>
      %63 = arith.addf %60, %62 : vector<2x128xf32>
      %c0_33 = arith.constant 0 : index
      %c0_34 = arith.constant 0 : index
      %64 = vector.load %arg9[%c0_33, %c0_34] : memref<2x128xf32, #tpu.memory_space<vmem>>, vector<2x128xf32>
      tpu.vector_store %arg9[%c0_33, %c0_34], %63 {strides = array<i32>} : memref<2x128xf32, #tpu.memory_space<vmem>>, vector<2x128xf32>,
    } else {
    }
    return
  }
  func.func @transform_0(%arg0: i32, %arg1: i32) -> (i32, i32, i32) {
    %c0_i32 = arith.constant 0 : i32
    %c0_i32_0 = arith.constant 0 : i32
    return %arg0, %c0_i32, %arg1 : i32, i32, i32
  }
  func.func @transform_1(%arg0: i32, %arg1: i32) -> (i32, i32, i32) {
    %c0_i32 = arith.constant 0 : i32
    %c0_i32_0 = arith.constant 0 : i32
    %c0_i32_1 = arith.constant 0 : i32
    %c0_i32_2 = arith.constant 0 : i32
    return %c0_i32, %c0_i32_0, %c0_i32_1 : i32, i32, i32
  }
  func.func @transform_2(%arg0: i32, %arg1: i32) -> (i32, i32) {
    %c0_i32 = arith.constant 0 : i32
    %c0_i32_0 = arith.constant 0 : i32
    return %arg0, %c0_i32 : i32, i32
  }
  func.func @transform_3(%arg0: i32, %arg1: i32) -> (i32, i32) {
    %c0_i32 = arith.constant 0 : i32
    %c0_i32_0 = arith.constant 0 : i32
    %c0_i32_1 = arith.constant 0 : i32
    return %c0_i32, %c0_i32_0 : i32, i32
  }
  func.func @transform_4(%arg0: i32, %arg1: i32) -> (i32, i32) {
    %c0_i32 = arith.constant 0 : i32
    %c0_i32_0 = arith.constant 0 : i32
    %c0_i32_1 = arith.constant 0 : i32
    return %c0_i32, %c0_i32_0 : i32, i32
  }
  func.func @transform_5(%arg0: i32, %arg1: i32) -> (i32, i32) {
    %c0_i32 = arith.constant 0 : i32
    %c0_i32_0 = arith.constant 0 : i32
    %c0_i32_1 = arith.constant 0 : i32
    return %c0_i32, %c0_i32_0 : i32, i32
  }
  func.func @transform_6(%arg0: i32, %arg1: i32) -> (i32, i32) {
    %c0_i32 = arith.constant 0 : i32
    %c0_i32_0 = arith.constant 0 : i32
    %c0_i32_1 = arith.constant 0 : i32
    return %c0_i32, %c0_i32_0 : i32, i32
  }
  func.func @transform_7(%arg0: i32, %arg1: i32) -> (i32, i32) {
    %c0_i32 = arith.constant 0 : i32
    %c0_i32_0 = arith.constant 0 : i32
    return %arg0, %c0_i32 : i32, i32
  }
}

</mosaic_0001>

<llo_original>
// kernel: classifier_module_last.1
$region0: #{classifier_module_last.1}
  #allocation0 [shape = 'u32[]', space=smem, size = 0x4, offset = 0x4, fixed_abs, tag = 'smem constant byte address 0x4 - core index']
  #allocation1 [shape = 'u32[144,128]{1,0:T(1,128)}', space=vmem, size = 0x12000, scoped, tag = 'internal scratch']
  #allocation2 [shape = 'f32[2,128]{1,0:T(2,128)}', space=vmem, size = 0x400, scoped, tag = 'scratch operand']
  %s0 = inlined_call_operand.vmem [shape: f32[2,4,256], index: 0, kind: input, shape index: {}]
  %s1 = inlined_call_operand.vmem [shape: f32[2,4,1], index: 1, kind: input, shape index: {}]
  %s2 = inlined_call_operand.vmem [shape: f32[2,128], index: 2, kind: input, shape index: {}]
  %s3 = inlined_call_operand.vmem [shape: f32[128,128], index: 3, kind: input, shape index: {}]
  %s4 = inlined_call_operand.hbm [shape: f32[128,128], index: 4, kind: input, shape index: {}]
  %s5 = inlined_call_operand.vmem [shape: f32[4,128], index: 5, kind: input, shape index: {}]
  %s6 = inlined_call_operand.vmem [shape: f32[1,128], index: 6, kind: input, shape index: {}]
  %s7 = inlined_call_operand.hbm [shape: f32[2,128], index: 7, kind: output, shape index: {}]
  %s8 = sld [smem:[#allocation0]]
  $region50: #{classifier_module_last.1} parent=0
    _
  %s10 = ssub.s32 1, %s8
  %s11 = scalar_select 0, %s10, %s8
  $region1: #{classifier_module_last.1} parent=0
    #allocation3 [shape = 'u8[65536]{0}', space=vmem, size = 0x10000, scoped, tag = 'input window, operand 4, single buffered']
    #allocation4 [shape = 's32[1]{0}', space=sflag, size = 0x4, scoped, tag = 'scoped memory for classifier_module_last.1']
    #allocation5 [shape = 's32[1]{0}', space=sflag, size = 0x4, scoped, tag = 'scoped memory for classifier_module_last.1']
    #allocation6 [shape = 'u8[1024]{0}', space=vmem, size = 0x400, scoped, tag = 'output window, operand 0, single buffered']
    %12 = vsyncpa [#allocation4], 0
    %13 = vsyncpa [#allocation5], 0
    // Predicated region
    $region2: #{classifier_module_last.1} parent=1 // pred_check
      _
    $region3: #{classifier_module_last.1} parent=1 // pred_check_branch
      %15 = sbr.rel (0) target = $region5
    $region4: #{classifier_module_last.1} parent=1 // pred_region
      _
    $region5: #{classifier_module_last.1} parent=1 // pred_fallthru
      _
    // Predicated region
    $region6: #{classifier_module_last.1} parent=1 // pred_check
      _
    $region7: #{classifier_module_last.1} parent=1 // pred_check_branch
      %17 = sbr.rel (0) target = $region9
    $region8: #{classifier_module_last.1} parent=1 // pred_region
      _
    $region9: #{classifier_module_last.1} parent=1 // pred_fallthru
      _
    // Predicated region
    $region10: #{classifier_module_last.1} parent=1 // pred_check
      _
    $region11: #{classifier_module_last.1} parent=1 // pred_check_branch
      %19 = sbr.rel (0) target = $region13
    $region12: #{classifier_module_last.1} parent=1 // pred_region
      _
    $region13: #{classifier_module_last.1} parent=1 // pred_fallthru
      _
    // Predicated region
    $region14: #{classifier_module_last.1} parent=1 // pred_check
      _
    $region15: #{classifier_module_last.1} parent=1 // pred_check_branch
      %21 = sbr.rel (0) target = $region17
    $region16: #{classifier_module_last.1} parent=1 // pred_region
      _
    $region17: #{classifier_module_last.1} parent=1 // pred_fallthru
      _
    // Predicated region
    $region18: #{classifier_module_last.1} parent=1 // pred_check
      _
    $region19: #{classifier_module_last.1} parent=1 // pred_check_branch
      %23 = sbr.rel (0) target = $region21
    $region20: #{classifier_module_last.1} parent=1 // pred_region
      %s25 = ssub.s32 2048, 2048
      %26 = vsyncadd [#allocation4], %s25
      %s27 = sshll.u32 [#allocation3], 4
      %s28 = int_to_ptr.vmem [resolvable:$true] %s27
      %33 = dma.hbm_to_vmem [thread:$0]  %s4, 2048, %s28, [#allocation4], 128, 128, 8
    $region21: #{classifier_module_last.1} parent=1 // pred_fallthru
      _
    // Predicated region
    $region22: #{classifier_module_last.1} parent=1 // pred_check
      _
    $region23: #{classifier_module_last.1} parent=1 // pred_check_branch
      %35 = sbr.rel (0) target = $region25
    $region24: #{classifier_module_last.1} parent=1 // pred_region
      _
    $region25: #{classifier_module_last.1} parent=1 // pred_fallthru
      _
    // Predicated region
    $region26: #{classifier_module_last.1} parent=1 // pred_check
      _
    $region27: #{classifier_module_last.1} parent=1 // pred_check_branch
      %37 = sbr.rel (0) target = $region29
    $region28: #{classifier_module_last.1} parent=1 // pred_region
      _
    $region29: #{classifier_module_last.1} parent=1 // pred_fallthru
      _
    // Predicated region
    $region30: #{classifier_module_last.1} parent=1 // pred_check
      _
    $region31: #{classifier_module_last.1} parent=1 // pred_check_branch
      %39 = sbr.rel (0) target = $region33
    $region32: #{classifier_module_last.1} parent=1 // pred_region
      %40 = dma.done [#allocation4], 2048
    $region33: #{classifier_module_last.1} parent=1 // pred_fallthru
      _
    %p41 = scmp.eq.s32.totalorder 0, 0
    // Predicated region
    $region34: #{classifier_module_last.1} parent=1 // pred_check
      %p42 = pneg %p41
    $region35: #{classifier_module_last.1} parent=1 // pred_check_branch
      %44 = sbr.rel (%p42) target = $region37
    $region36: #{classifier_module_last.1} parent=1 // pred_region
      %45 = vst [vmem:[#allocation2] sm:$0x3] 0.0
    $region37: #{classifier_module_last.1} parent=1 // pred_fallthru
      _
    %v46 = vld [vmem:[%s1] sm:$0xf]
    %v47 = vld [vmem:[%s1 + $0x4] sm:$0xf]
    %v48 = vld [vmem:[%s0] sm:$0xff]
    %v49 = vld [vmem:[%s0 + $0x8] sm:$0xff]
    %51 = vset.pattern.permute.xlu0 0
    %52 = vperm.xlu0 %51, %v46
    %v53 = vpop.permute.xlu0 %52
    %v55 = vunpack.c.l.s4 839922192
    %v56 = vunpack.c.0.s8 %v55
    %v57 = vlaneseq
    %v58 = vshrl.u32 %v57, 7
    %v59 = vsub.s32 %v56, %v58
    %v60 = vrot.slane %v53, %v59
    %v62 = vmul.f32 %v48, %v60
    %v63 = vmul.f32 %v49, %v60
    %65 = vset.pattern.permute.xlu0 0
    %66 = vperm.xlu0 %65, %v47
    %v67 = vpop.permute.xlu0 %66
    %v69 = vunpack.c.l.s4 839922192
    %v70 = vunpack.c.0.s8 %v69
    %v71 = vlaneseq
    %v72 = vshrl.u32 %v71, 7
    %v73 = vsub.s32 %v70, %v72
    %v74 = vrot.slane %v67, %v73
    %v76 = vadd.f32 %v62, %v74
    %v77 = vadd.f32 %v63, %v74
    %v78 = vmax.f32 %v76, 0.0
    %v79 = vmax.f32 %v77, 0.0
    %v80 = vld [vmem:[#allocation2] sm:$0x3]
    %v83 = vcombine.high %v78, %v78
    %v84 = vcombine.high %v79, %v79
    %vm87 = vcmask 1043456
    %v88 = vsel %vm87, %v78, 0.0
    %v89 = vsel %vm87, %v83, 0.0
    %v90 = vadd.f32 %v88, %v89
    %91 = vadd.xlane.f32.xlu0 %v90
    %v92 = vpop.xlane.xlu0 %91
    %v93 = vsel %vm87, %v79, 0.0
    %v94 = vsel %vm87, %v84, 0.0
    %v95 = vadd.f32 %v93, %v94
    %96 = vadd.xlane.f32.xlu0 %v95
    %v97 = vpop.xlane.xlu0 %96
    %v100 = vlaneseq
    %v101 = vand.u32 %v100, 127
    %v102 = vlaneseq
    %v103 = vshrl.u32 %v102, 7
    %v104 = vsub.s32 %v101, %v103
    %v105 = vrot.slane %v92, %v104
    %v106 = vlaneseq
    %v107 = vshrl.u32 %v106, 7
    %v108 = vsub.s32 %v101, %v107
    %v109 = vrot.slane %v97, %v108
    %vm110 = vcmask 1041409
    %v111 = vsel %vm110, %v109, %v105
    %v113 = vadd.f32 %v80, %v111
    %vm114 = vcmask 25600
    %115 = vst.msk [vmem:[#allocation2] sm:$0x3] %vm114, %v113
    // Predicated region
    $region38: #{classifier_module_last.1} parent=1 // pred_check
      %p116 = pneg %p41
    $region39: #{classifier_module_last.1} parent=1 // pred_check_branch
      %118 = sbr.rel (%p116) target = $region41
    $region40: #{classifier_module_last.1} parent=1 // pred_region
      %v119 = vld [vmem:[#allocation2] sm:$0x3]
      %v120 = vmul.f32 %v119, 0.00390625
      %v121 = vld [vmem:[%s2] sm:$0x3]
      %v122 = vadd.f32 %v120, %v121
      %v123 = vld [vmem:[%s3] sm:$0xff]
      %v124 = vld [vmem:[%s3 + $0x8] sm:$0xff]
      %v125 = vld [vmem:[%s3 + $0x10] sm:$0xff]
      %v126 = vld [vmem:[%s3 + $0x18] sm:$0xff]
      %v127 = vld [vmem:[%s3 + $0x20] sm:$0xff]
      %v128 = vld [vmem:[%s3 + $0x28] sm:$0xff]
      %v129 = vld [vmem:[%s3 + $0x30] sm:$0xff]
      %v130 = vld [vmem:[%s3 + $0x38] sm:$0xff]
      %v131 = vld [vmem:[%s3 + $0x40] sm:$0xff]
      %v132 = vld [vmem:[%s3 + $0x48] sm:$0xff]
      %v133 = vld [vmem:[%s3 + $0x50] sm:$0xff]
      %v134 = vld [vmem:[%s3 + $0x58] sm:$0xff]
      %v135 = vld [vmem:[%s3 + $0x60] sm:$0xff]
      %v136 = vld [vmem:[%s3 + $0x68] sm:$0xff]
      %v137 = vld [vmem:[%s3 + $0x70] sm:$0xff]
      %v138 = vld [vmem:[%s3 + $0x78] sm:$0xff]
      %v139 = vld [vmem:[%s5] sm:$0xf]
      %v140 = vlaneseq
      %v141 = vshrl.u32 %v140, 7
      %v142 = vsub.s32 0, %v141
      %v143 = vrot.slane %v139, %v142
      %144 = vmatprep.subr.mxu0 0.0
      %145 = vmatpush1.msra.mxu0 %v123
      %146 = vmatprep.subr.mxu0 0.0
      %147 = vmatpush1.msra.mxu0 %v124
      %148 = vmatprep.subr.mxu0 0.0
      %149 = vmatpush1.msra.mxu0 %v125
      %150 = vmatprep.subr.mxu0 0.0
      %151 = vmatpush1.msra.mxu0 %v126
      %152 = vmatprep.subr.mxu0 0.0
      %153 = vmatpush1.msra.mxu0 %v127
      %154 = vmatprep.subr.mxu0 0.0
      %155 = vmatpush1.msra.mxu0 %v128
      %156 = vmatprep.subr.mxu0 0.0
      %157 = vmatpush1.msra.mxu0 %v129
      %158 = vmatprep.subr.mxu0 0.0
      %159 = vmatpush1.msra.mxu0 %v130
      %160 = vmatprep.subr.mxu0 0.0
      %161 = vmatpush1.msra.mxu0 %v131
      %162 = vmatprep.subr.mxu0 0.0
      %163 = vmatpush1.msra.mxu0 %v132
      %164 = vmatprep.subr.mxu0 0.0
      %165 = vmatpush1.msra.mxu0 %v133
      %166 = vmatprep.subr.mxu0 0.0
      %167 = vmatpush1.msra.mxu0 %v134
      %168 = vmatprep.subr.mxu0 0.0
      %169 = vmatpush1.msra.mxu0 %v135
      %170 = vmatprep.subr.mxu0 0.0
      %171 = vmatpush1.msra.mxu0 %v136
      %172 = vmatprep.subr.mxu0 0.0
      %173 = vmatpush1.msra.mxu0 %v137
      %174 = vmatprep.subr.mxu0 0.0
      %175 = vmatpush1.msra.mxu0 %v138
      %176 = vmatprep.subr.mxu0 0.0
      %177 = vmatpush1.msra.mxu0 0.0
      %178 = vmatprep.subr.mxu0 0.0
      %179 = vmatpush1.msra.mxu0 0.0
      %180 = vmatprep.subr.mxu0 0.0
      %181 = vmatpush1.msra.mxu0 0.0
      %182 = vmatprep.subr.mxu0 0.0
      %183 = vmatpush1.msra.mxu0 0.0
      %184 = vmatprep.subr.mxu0 0.0
      %185 = vmatpush1.msra.mxu0 0.0
      %186 = vmatprep.subr.mxu0 0.0
      %187 = vmatpush1.msra.mxu0 0.0
      %188 = vmatprep.subr.mxu0 0.0
      %189 = vmatpush1.msra.mxu0 0.0
      %190 = vmatprep.subr.mxu0 0.0
      %191 = vmatpush1.msra.mxu0 0.0
      %192 = vmatprep.subr.mxu0 0.0
      %193 = vmatpush1.msra.mxu0 0.0
      %194 = vmatprep.subr.mxu0 0.0
      %195 = vmatpush1.msra.mxu0 0.0
      %196 = vmatprep.subr.mxu0 0.0
      %197 = vmatpush1.msra.mxu0 0.0
      %198 = vmatprep.subr.mxu0 0.0
      %199 = vmatpush1.msra.mxu0 0.0
      %200 = vmatprep.subr.mxu0 0.0
      %201 = vmatpush1.msra.mxu0 0.0
      %202 = vmatprep.subr.mxu0 0.0
      %203 = vmatpush1.msra.mxu0 0.0
      %204 = vmatprep.subr.mxu0 0.0
      %205 = vmatpush1.msra.mxu0 0.0
      %206 = vmatprep.subr.mxu0 0.0
      %207 = vmatpush1.msra.mxu0 0.0
      %208 = vmatprep.mubr.f32.mxu0 0.0
      %209 = vmatmul.mubr.f32.gmra.mrb[0].mxu0 %v122
      %v210 = vpop.f32.mrb[0].mxu0
      %v211 = vadd.f32 %v143, %v210
      %v212 = vpop.f32.mrb[0].mxu0
      %213 = vdwg.mxu0
      %v214 = vld [vmem:[#allocation3] sm:$0xff]
      %v215 = vld [vmem:[#allocation3 + $0x8] sm:$0xff]
      %v216 = vld [vmem:[#allocation3 + $0x10] sm:$0xff]
      %v217 = vld [vmem:[#allocation3 + $0x18] sm:$0xff]
      %v218 = vld [vmem:[#allocation3 + $0x20] sm:$0xff]
      %v219 = vld [vmem:[#allocation3 + $0x28] sm:$0xff]
      %v220 = vld [vmem:[#allocation3 + $0x30] sm:$0xff]
      %v221 = vld [vmem:[#allocation3 + $0x38] sm:$0xff]
      %v222 = vld [vmem:[#allocation3 + $0x40] sm:$0xff]
      %v223 = vld [vmem:[#allocation3 + $0x48] sm:$0xff]
      %v224 = vld [vmem:[#allocation3 + $0x50] sm:$0xff]
      %v225 = vld [vmem:[#allocation3 + $0x58] sm:$0xff]
      %v226 = vld [vmem:[#allocation3 + $0x60] sm:$0xff]
      %v227 = vld [vmem:[#allocation3 + $0x68] sm:$0xff]
      %v228 = vld [vmem:[#allocation3 + $0x70] sm:$0xff]
      %v229 = vld [vmem:[#allocation3 + $0x78] sm:$0xff]
      %v230 = vld [vmem:[%s6] sm:$0x1]
      %v232 = vlaneseq
      %v233 = vshrl.u32 %v232, 7
      %v234 = vsub.s32 0, %v233
      %v235 = vrot.slane %v230, %v234
      %237 = vmatprep.subr.mxu0 0.0
      %238 = vmatpush1.msra.mxu0 %v214
      %239 = vmatprep.subr.mxu0 0.0
      %240 = vmatpush1.msra.mxu0 %v215
      %241 = vmatprep.subr.mxu0 0.0
      %242 = vmatpush1.msra.mxu0 %v216
      %243 = vmatprep.subr.mxu0 0.0
      %244 = vmatpush1.msra.mxu0 %v217
      %245 = vmatprep.subr.mxu0 0.0
      %246 = vmatpush1.msra.mxu0 %v218
      %247 = vmatprep.subr.mxu0 0.0
      %248 = vmatpush1.msra.mxu0 %v219
      %249 = vmatprep.subr.mxu0 0.0
      %250 = vmatpush1.msra.mxu0 %v220
      %251 = vmatprep.subr.mxu0 0.0
      %252 = vmatpush1.msra.mxu0 %v221
      %253 = vmatprep.subr.mxu0 0.0
      %254 = vmatpush1.msra.mxu0 %v222
      %255 = vmatprep.subr.mxu0 0.0
      %256 = vmatpush1.msra.mxu0 %v223
      %257 = vmatprep.subr.mxu0 0.0
      %258 = vmatpush1.msra.mxu0 %v224
      %259 = vmatprep.subr.mxu0 0.0
      %260 = vmatpush1.msra.mxu0 %v225
      %261 = vmatprep.subr.mxu0 0.0
      %262 = vmatpush1.msra.mxu0 %v226
      %263 = vmatprep.subr.mxu0 0.0
      %264 = vmatpush1.msra.mxu0 %v227
      %265 = vmatprep.subr.mxu0 0.0
      %266 = vmatpush1.msra.mxu0 %v228
      %267 = vmatprep.subr.mxu0 0.0
      %268 = vmatpush1.msra.mxu0 %v229
      %269 = vmatprep.subr.mxu0 0.0
      %270 = vmatpush1.msra.mxu0 0.0
      %271 = vmatprep.subr.mxu0 0.0
      %272 = vmatpush1.msra.mxu0 0.0
      %273 = vmatprep.subr.mxu0 0.0
      %274 = vmatpush1.msra.mxu0 0.0
      %275 = vmatprep.subr.mxu0 0.0
      %276 = vmatpush1.msra.mxu0 0.0
      %277 = vmatprep.subr.mxu0 0.0
      %278 = vmatpush1.msra.mxu0 0.0
      %279 = vmatprep.subr.mxu0 0.0
      %280 = vmatpush1.msra.mxu0 0.0
      %281 = vmatprep.subr.mxu0 0.0
      %282 = vmatpush1.msra.mxu0 0.0
      %283 = vmatprep.subr.mxu0 0.0
      %284 = vmatpush1.msra.mxu0 0.0
      %285 = vmatprep.subr.mxu0 0.0
      %286 = vmatpush1.msra.mxu0 0.0
      %287 = vmatprep.subr.mxu0 0.0
      %288 = vmatpush1.msra.mxu0 0.0
      %289 = vmatprep.subr.mxu0 0.0
      %290 = vmatpush1.msra.mxu0 0.0
      %291 = vmatprep.subr.mxu0 0.0
      %292 = vmatpush1.msra.mxu0 0.0
      %293 = vmatprep.subr.mxu0 0.0
      %294 = vmatpush1.msra.mxu0 0.0
      %295 = vmatprep.subr.mxu0 0.0
      %296 = vmatpush1.msra.mxu0 0.0
      %297 = vmatprep.subr.mxu0 0.0
      %298 = vmatpush1.msra.mxu0 0.0
      %299 = vmatprep.subr.mxu0 0.0
      %300 = vmatpush1.msra.mxu0 0.0
      %301 = vmatprep.mubr.f32.mxu0 0.0
      %302 = vmatmul.mubr.f32.gmra.mrb[0].mxu0 %v211
      %v303 = vpop.f32.mrb[0].mxu0
      %v304 = vadd.f32 %v235, %v303
      %v305 = vpop.f32.mrb[0].mxu0
      %306 = vdwg.mxu0
      %v307 = vsub.f32 %v122, %v304
      %v308 = vmax.f32 %v307, 0.0
      %309 = vmatprep.subr.mxu0 0.0
      %310 = vmatpush1.msra.mxu0 %v123
      %311 = vmatprep.subr.mxu0 0.0
      %312 = vmatpush1.msra.mxu0 %v124
      %313 = vmatprep.subr.mxu0 0.0
      %314 = vmatpush1.msra.mxu0 %v125
      %315 = vmatprep.subr.mxu0 0.0
      %316 = vmatpush1.msra.mxu0 %v126
      %317 = vmatprep.subr.mxu0 0.0
      %318 = vmatpush1.msra.mxu0 %v127
      %319 = vmatprep.subr.mxu0 0.0
      %320 = vmatpush1.msra.mxu0 %v128
      %321 = vmatprep.subr.mxu0 0.0
      %322 = vmatpush1.msra.mxu0 %v129
      %323 = vmatprep.subr.mxu0 0.0
      %324 = vmatpush1.msra.mxu0 %v130
      %325 = vmatprep.subr.mxu0 0.0
      %326 = vmatpush1.msra.mxu0 %v131
      %327 = vmatprep.subr.mxu0 0.0
      %328 = vmatpush1.msra.mxu0 %v132
      %329 = vmatprep.subr.mxu0 0.0
      %330 = vmatpush1.msra.mxu0 %v133
      %331 = vmatprep.subr.mxu0 0.0
      %332 = vmatpush1.msra.mxu0 %v134
      %333 = vmatprep.subr.mxu0 0.0
      %334 = vmatpush1.msra.mxu0 %v135
      %335 = vmatprep.subr.mxu0 0.0
      %336 = vmatpush1.msra.mxu0 %v136
      %337 = vmatprep.subr.mxu0 0.0
      %338 = vmatpush1.msra.mxu0 %v137
      %339 = vmatprep.subr.mxu0 0.0
      %340 = vmatpush1.msra.mxu0 %v138
      %341 = vmatprep.subr.mxu0 0.0
      %342 = vmatpush1.msra.mxu0 0.0
      %343 = vmatprep.subr.mxu0 0.0
      %344 = vmatpush1.msra.mxu0 0.0
      %345 = vmatprep.subr.mxu0 0.0
      %346 = vmatpush1.msra.mxu0 0.0
      %347 = vmatprep.subr.mxu0 0.0
      %348 = vmatpush1.msra.mxu0 0.0
      %349 = vmatprep.subr.mxu0 0.0
      %350 = vmatpush1.msra.mxu0 0.0
      %351 = vmatprep.subr.mxu0 0.0
      %352 = vmatpush1.msra.mxu0 0.0
      %353 = vmatprep.subr.mxu0 0.0
      %354 = vmatpush1.msra.mxu0 0.0
      %355 = vmatprep.subr.mxu0 0.0
      %356 = vmatpush1.msra.mxu0 0.0
      %357 = vmatprep.subr.mxu0 0.0
      %358 = vmatpush1.msra.mxu0 0.0
      %359 = vmatprep.subr.mxu0 0.0
      %360 = vmatpush1.msra.mxu0 0.0
      %361 = vmatprep.subr.mxu0 0.0
      %362 = vmatpush1.msra.mxu0 0.0
      %363 = vmatprep.subr.mxu0 0.0
      %364 = vmatpush1.msra.mxu0 0.0
      %365 = vmatprep.subr.mxu0 0.0
      %366 = vmatpush1.msra.mxu0 0.0
      %367 = vmatprep.subr.mxu0 0.0
      %368 = vmatpush1.msra.mxu0 0.0
      %369 = vmatprep.subr.mxu0 0.0
      %370 = vmatpush1.msra.mxu0 0.0
      %371 = vmatprep.subr.mxu0 0.0
      %372 = vmatpush1.msra.mxu0 0.0
      %373 = vmatprep.mubr.f32.mxu0 0.0
      %374 = vmatmul.mubr.f32.gmra.mrb[0].mxu0 %v308
      %v375 = vpop.f32.mrb[0].mxu0
      %v376 = vadd.f32 %v143, %v375
      %v377 = vpop.f32.mrb[0].mxu0
      %378 = vdwg.mxu0
      %v379 = vlaneseq
      %v380 = vshrl.u32 %v379, 7
      %v381 = vsub.s32 1, %v380
      %v382 = vrot.slane %v139, %v381
      %v383 = vmul.f32 %v376, %v382
      %v384 = vadd.f32 %v383, %v211
      %385 = vmatprep.subr.mxu0 0.0
      %386 = vmatpush1.msra.mxu0 %v214
      %387 = vmatprep.subr.mxu0 0.0
      %388 = vmatpush1.msra.mxu0 %v215
      %389 = vmatprep.subr.mxu0 0.0
      %390 = vmatpush1.msra.mxu0 %v216
      %391 = vmatprep.subr.mxu0 0.0
      %392 = vmatpush1.msra.mxu0 %v217
      %393 = vmatprep.subr.mxu0 0.0
      %394 = vmatpush1.msra.mxu0 %v218
      %395 = vmatprep.subr.mxu0 0.0
      %396 = vmatpush1.msra.mxu0 %v219
      %397 = vmatprep.subr.mxu0 0.0
      %398 = vmatpush1.msra.mxu0 %v220
      %399 = vmatprep.subr.mxu0 0.0
      %400 = vmatpush1.msra.mxu0 %v221
      %401 = vmatprep.subr.mxu0 0.0
      %402 = vmatpush1.msra.mxu0 %v222
      %403 = vmatprep.subr.mxu0 0.0
      %404 = vmatpush1.msra.mxu0 %v223
      %405 = vmatprep.subr.mxu0 0.0
      %406 = vmatpush1.msra.mxu0 %v224
      %407 = vmatprep.subr.mxu0 0.0
      %408 = vmatpush1.msra.mxu0 %v225
      %409 = vmatprep.subr.mxu0 0.0
      %410 = vmatpush1.msra.mxu0 %v226
      %411 = vmatprep.subr.mxu0 0.0
      %412 = vmatpush1.msra.mxu0 %v227
      %413 = vmatprep.subr.mxu0 0.0
      %414 = vmatpush1.msra.mxu0 %v228
      %415 = vmatprep.subr.mxu0 0.0
      %416 = vmatpush1.msra.mxu0 %v229
      %417 = vmatprep.subr.mxu0 0.0
      %418 = vmatpush1.msra.mxu0 0.0
      %419 = vmatprep.subr.mxu0 0.0
      %420 = vmatpush1.msra.mxu0 0.0
      %421 = vmatprep.subr.mxu0 0.0
      %422 = vmatpush1.msra.mxu0 0.0
      %423 = vmatprep.subr.mxu0 0.0
      %424 = vmatpush1.msra.mxu0 0.0
      %425 = vmatprep.subr.mxu0 0.0
      %426 = vmatpush1.msra.mxu0 0.0
      %427 = vmatprep.subr.mxu0 0.0
      %428 = vmatpush1.msra.mxu0 0.0
      %429 = vmatprep.subr.mxu0 0.0
      %430 = vmatpush1.msra.mxu0 0.0
      %431 = vmatprep.subr.mxu0 0.0
      %432 = vmatpush1.msra.mxu0 0.0
      %433 = vmatprep.subr.mxu0 0.0
      %434 = vmatpush1.msra.mxu0 0.0
      %435 = vmatprep.subr.mxu0 0.0
      %436 = vmatpush1.msra.mxu0 0.0
      %437 = vmatprep.subr.mxu0 0.0
      %438 = vmatpush1.msra.mxu0 0.0
      %439 = vmatprep.subr.mxu0 0.0
      %440 = vmatpush1.msra.mxu0 0.0
      %441 = vmatprep.subr.mxu0 0.0
      %442 = vmatpush1.msra.mxu0 0.0
      %443 = vmatprep.subr.mxu0 0.0
      %444 = vmatpush1.msra.mxu0 0.0
      %445 = vmatprep.subr.mxu0 0.0
      %446 = vmatpush1.msra.mxu0 0.0
      %447 = vmatprep.subr.mxu0 0.0
      %448 = vmatpush1.msra.mxu0 0.0
      %449 = vmatprep.mubr.f32.mxu0 0.0
      %450 = vmatmul.mubr.f32.gmra.mrb[0].mxu0 %v384
      %v451 = vpop.f32.mrb[0].mxu0
      %v452 = vadd.f32 %v235, %v451
      %v453 = vpop.f32.mrb[0].mxu0
      %454 = vdwg.mxu0
      %v455 = vsub.f32 %v122, %v452
      %v456 = vmax.f32 %v455, 0.0
      %457 = vmatprep.subr.mxu0 0.0
      %458 = vmatpush1.msra.mxu0 %v123
      %459 = vmatprep.subr.mxu0 0.0
      %460 = vmatpush1.msra.mxu0 %v124
      %461 = vmatprep.subr.mxu0 0.0
      %462 = vmatpush1.msra.mxu0 %v125
      %463 = vmatprep.subr.mxu0 0.0
      %464 = vmatpush1.msra.mxu0 %v126
      %465 = vmatprep.subr.mxu0 0.0
      %466 = vmatpush1.msra.mxu0 %v127
      %467 = vmatprep.subr.mxu0 0.0
      %468 = vmatpush1.msra.mxu0 %v128
      %469 = vmatprep.subr.mxu0 0.0
      %470 = vmatpush1.msra.mxu0 %v129
      %471 = vmatprep.subr.mxu0 0.0
      %472 = vmatpush1.msra.mxu0 %v130
      %473 = vmatprep.subr.mxu0 0.0
      %474 = vmatpush1.msra.mxu0 %v131
      %475 = vmatprep.subr.mxu0 0.0
      %476 = vmatpush1.msra.mxu0 %v132
      %477 = vmatprep.subr.mxu0 0.0
      %478 = vmatpush1.msra.mxu0 %v133
      %479 = vmatprep.subr.mxu0 0.0
      %480 = vmatpush1.msra.mxu0 %v134
      %481 = vmatprep.subr.mxu0 0.0
      %482 = vmatpush1.msra.mxu0 %v135
      %483 = vmatprep.subr.mxu0 0.0
      %484 = vmatpush1.msra.mxu0 %v136
      %485 = vmatprep.subr.mxu0 0.0
      %486 = vmatpush1.msra.mxu0 %v137
      %487 = vmatprep.subr.mxu0 0.0
      %488 = vmatpush1.msra.mxu0 %v138
      %489 = vmatprep.subr.mxu0 0.0
      %490 = vmatpush1.msra.mxu0 0.0
      %491 = vmatprep.subr.mxu0 0.0
      %492 = vmatpush1.msra.mxu0 0.0
      %493 = vmatprep.subr.mxu0 0.0
      %494 = vmatpush1.msra.mxu0 0.0
      %495 = vmatprep.subr.mxu0 0.0
      %496 = vmatpush1.msra.mxu0 0.0
      %497 = vmatprep.subr.mxu0 0.0
      %498 = vmatpush1.msra.mxu0 0.0
      %499 = vmatprep.subr.mxu0 0.0
      %500 = vmatpush1.msra.mxu0 0.0
      %501 = vmatprep.subr.mxu0 0.0
      %502 = vmatpush1.msra.mxu0 0.0
      %503 = vmatprep.subr.mxu0 0.0
      %504 = vmatpush1.msra.mxu0 0.0
      %505 = vmatprep.subr.mxu0 0.0
      %506 = vmatpush1.msra.mxu0 0.0
      %507 = vmatprep.subr.mxu0 0.0
      %508 = vmatpush1.msra.mxu0 0.0
      %509 = vmatprep.subr.mxu0 0.0
      %510 = vmatpush1.msra.mxu0 0.0
      %511 = vmatprep.subr.mxu0 0.0
      %512 = vmatpush1.msra.mxu0 0.0
      %513 = vmatprep.subr.mxu0 0.0
      %514 = vmatpush1.msra.mxu0 0.0
      %515 = vmatprep.subr.mxu0 0.0
      %516 = vmatpush1.msra.mxu0 0.0
      %517 = vmatprep.subr.mxu0 0.0
      %518 = vmatpush1.msra.mxu0 0.0
      %519 = vmatprep.subr.mxu0 0.0
      %520 = vmatpush1.msra.mxu0 0.0
      %521 = vmatprep.mubr.f32.mxu0 0.0
      %522 = vmatmul.mubr.f32.gmra.mrb[0].mxu0 %v456
      %v523 = vpop.f32.mrb[0].mxu0
      %v524 = vadd.f32 %v143, %v523
      %v525 = vpop.f32.mrb[0].mxu0
      %526 = vdwg.mxu0
      %v527 = vmul.f32 %v524, %v382
      %v528 = vadd.f32 %v527, %v384
      %v529 = vlaneseq
      %v530 = vshrl.u32 %v529, 7
      %v531 = vsub.s32 2, %v530
      %v532 = vrot.slane %v139, %v531
      %v533 = vmul.f32 %v528, %v532
      %v534 = vlaneseq
      %v535 = vshrl.u32 %v534, 7
      %v536 = vsub.s32 3, %v535
      %v537 = vrot.slane %v139, %v536
      %v538 = vadd.f32 %v533, %v537
      %539 = vst [vmem:[#allocation6] sm:$0x3] %v538
    $region41: #{classifier_module_last.1} parent=1 // pred_fallthru
      _
    // Predicated region
    $region42: #{classifier_module_last.1} parent=1 // pred_check
      _
    $region43: #{classifier_module_last.1} parent=1 // pred_check_branch
      %541 = sbr.rel (0) target = $region45
    $region44: #{classifier_module_last.1} parent=1 // pred_region
      %s543 = ssub.s32 32, 32
      %544 = vsyncadd [#allocation5], %s543
      %s546 = sshll.u32 [#allocation6], 4
      %s547 = int_to_ptr.vmem [resolvable:$true] %s546
      %549 = dma.vmem_to_hbm [thread:$0]  %s547, 32, %s7, [#allocation5]
    $region45: #{classifier_module_last.1} parent=1 // pred_fallthru
      _
    // Predicated region
    $region46: #{classifier_module_last.1} parent=1 // pred_check
      _
    $region47: #{classifier_module_last.1} parent=1 // pred_check_branch
      %551 = sbr.rel (0) target = $region49
    $region48: #{classifier_module_last.1} parent=1 // pred_region
      %552 = dma.done [#allocation5], 32
    $region49: #{classifier_module_last.1} parent=1 // pred_fallthru
      _
    %553 = vsyncpa [#allocation4], 1
    %554 = vsyncpa [#allocation5], 1

</llo_original>
